<compile_context>
chip_gen: v7x
topology: tpu7x:2x2x1
jax: 0.10.0
libtpu: 0.0.40
codegen_flags: <defaults>
</compile_context>

<pallas_src>
import jax
import jax.numpy as jnp
import numpy as np
from jax.experimental import pallas as pl
from jax.experimental.pallas import tpu as pltpu

# --- problem sizes (small, consistent with the module) ---
B = 2          # batch
V = 64         # input vertices
P = 4          # healpix pooling factor
N = V // P     # vertices after pooling (graph size for the Laplacian)
C_IN = 4       # in_channels
C_OUT = 8      # out_channels
K = 3          # kernel_size (Chebyshev polynomial order)
BN_EPS = 1e-5

LANES = 128                      # lane width of the packed constant / output slabs
BCIN = B * C_IN                  # columns of the pooled data slab (batch folded on lanes)
BCOUT = B * C_OUT                # columns of the conv output slab

# row offsets inside the packed constant slab (all multiples of 8)
ROW_T = 0                        # Tcat : rows [0, N),            cols [0, K*N)
ROW_W = N                        # Wstk : rows [N, N + K*BCIN),   cols [0, BCOUT)
ROW_BIAS = N + K * BCIN          # bias : row  ROW_BIAS,          cols [0, BCOUT)
CONST_ROWS = ((ROW_BIAS + 1 + 7) // 8) * 8   # pad to a multiple of 8 sublanes

assert K * N <= LANES and BCOUT <= LANES


def _fused_kernel(x_ref, c_ref, o_ref):
    """MaxPool + Chebyshev graph conv (exactly 2 MXU matmuls) + BatchNorm1d + ReLU.

    x_ref : (N, P*B*C_IN)        input rows = coarse vertices, cols ordered (p, b, c)
    c_ref : (CONST_ROWS, 128)    packed constants: Tcat, Wstk, bias (see row offsets)
    o_ref : (N, 128)             lane-dense output; valid data in [:, :B*C_OUT], cols (b, o)
    """
    xs = x_ref[...]

    # --- Healpix max pooling: P-1 elementwise maxima over the (b, c) column blocks ---
    pooled = xs[:, 0:BCIN]
    for p in range(1, P):
        pooled = jnp.maximum(pooled, xs[:, p * BCIN:(p + 1) * BCIN])   # (N, B*C_IN)

    # --- constants: static views into the single packed slab (no extra DMAs) ---
    tcat = c_ref[ROW_T:ROW_T + N, 0:K * N]                 # (N, K*N)   [T_0 | T_1 | T_2]
    wstk = c_ref[ROW_W:ROW_W + K * BCIN, 0:BCOUT]          # (K*B*C_IN, B*C_OUT)
    brow = c_ref[ROW_BIAS:ROW_BIAS + 1, 0:BCOUT]           # (1, B*C_OUT)

    # --- Chebyshev conv as exactly TWO MXU pushes ---
    # Xblk = blockdiag_k(pooled): row-block k carries `pooled` in column-block k.
    zero_blk = jnp.zeros_like(pooled)
    xblk = jnp.concatenate(
        [jnp.concatenate([pooled if kk == k else zero_blk for kk in range(K)], axis=1)
         for k in range(K)],
        axis=0)                                                         # (K*N, K*B*C_IN)
    s = jnp.dot(xblk, wstk, preferred_element_type=jnp.float32)         # (K*N, B*C_OUT)
    pre = jnp.dot(tcat, s, preferred_element_type=jnp.float32) + brow   # (N,   B*C_OUT)

    # --- BatchNorm1d(affine=False): batch stats over all B*N samples per channel o ---
    cnt = float(B * N)
    colsum = jnp.sum(pre, axis=0, keepdims=True)                        # (1, B*C_OUT)
    sum_o = colsum[:, 0:C_OUT]
    for b in range(1, B):
        sum_o = sum_o + colsum[:, b * C_OUT:(b + 1) * C_OUT]
    mean_o = sum_o / cnt                                                # (1, C_OUT)
    mean_bo = jnp.concatenate([mean_o] * B, axis=1)                     # (1, B*C_OUT)
    cen = pre - mean_bo
    colsq = jnp.sum(cen * cen, axis=0, keepdims=True)
    sq_o = colsq[:, 0:C_OUT]
    for b in range(1, B):
        sq_o = sq_o + colsq[:, b * C_OUT:(b + 1) * C_OUT]
    inv_o = jax.lax.rsqrt(sq_o / cnt + BN_EPS)                          # biased variance
    inv_bo = jnp.concatenate([inv_o] * B, axis=1)                       # (1, B*C_OUT)
    act = jnp.maximum(cen * inv_bo, 0.0)                                # (N, B*C_OUT)

    # --- single lane-dense full-width store; wrapper slices [:, :B*C_OUT] ---
    o_ref[...] = jnp.concatenate(
        [act, jnp.zeros((N, LANES - BCOUT), jnp.float32)], axis=1)


def spherical_cheb_bn_pool(x, const_slab):
    """x: (B, V, C_IN) -> (B, N, C_OUT)."""
    assert x.shape == (B, V, C_IN)
    # layout plumbing only: x[b, n*P + p, c] -> row n, col (p*B*C_IN + b*C_IN + c)
    x_slab = jnp.transpose(x.reshape(B, N, P, C_IN), (1, 2, 0, 3)).reshape(N, P * BCIN)

    flops = (2 * (K * N) * (K * BCIN) * BCOUT       # Xblk @ Wstk
             + 2 * N * (K * N) * BCOUT              # Tcat @ S
             + 8 * N * BCOUT + N * P * BCIN)        # pooling / BN / ReLU elementwise (rough)
    # lane-padded VMEM/DMA footprint (x pads 32 -> 128 lanes, const & out are 128 wide)
    bytes_accessed = 4 * (N * LANES + CONST_ROWS * LANES + N * LANES)

    vmem = pl.BlockSpec(memory_space=pltpu.MemorySpace.VMEM)
    out_pad = pl.pallas_call(
        _fused_kernel,
        out_shape=jax.ShapeDtypeStruct((N, LANES), jnp.float32),
        in_specs=[vmem, vmem],
        out_specs=vmem,
        compiler_params=pltpu.CompilerParams(
            # explicit and <= the default scoped limit on every generation (16 MiB on v5e)
            vmem_limit_bytes=16 * 1024 * 1024),
        cost_estimate=pl.CostEstimate(flops=flops, transcendentals=C_OUT,
                                      bytes_accessed=bytes_accessed),
    )(x_slab, const_slab)

    out2 = out_pad[:, :BCOUT]                                 # (N, B*C_OUT), cols (b, o)
    return jnp.transpose(out2.reshape(N, B, C_OUT), (1, 0, 2))  # (B, N, C_OUT)


def build_scaled_laplacian(n, lambda_max=2.0):
    """Dense scaled sym-normalized Laplacian of a ring graph (synthetic edge_index/weight).

    Matches torch_geometric get_laplacian('sym') + ChebConv rescaling:
    L_hat = (2/lambda_max) * (I - D^-1/2 A D^-1/2) - I.
    """
    idx = np.arange(n)
    A = np.zeros((n, n), np.float32)
    A[idx, (idx + 1) % n] = 1.0
    A[idx, (idx - 1) % n] = 1.0
    deg = A.sum(axis=1)
    dinv = np.where(deg > 0, 1.0 / np.sqrt(deg), 0.0).astype(np.float32)
    L = np.eye(n, dtype=np.float32) - dinv[:, None] * A * dinv[None, :]
    return ((2.0 / lambda_max) * L - np.eye(n, dtype=np.float32)).astype(np.float32)


def build_const_slab(lap_hat_np, weight_np, bias_np):
    """Pack all compile-time constants into one lane-padded (CONST_ROWS, 128) f32 slab.

    Tcat = [T_0 | ... | T_{K-1}]                       (N, K*N)
    Wstk = stack_k kron(I_B, W_k), rows ordered (k,b,c) (K*B*C_IN, B*C_OUT), cols (b,o)
    bias = bias tiled over batch, cols ordered (b,o)    (1, B*C_OUT)
    """
    ts = [np.eye(N, dtype=np.float32)]
    if K > 1:
        ts.append(lap_hat_np.copy())
    for _ in range(2, K):
        ts.append(2.0 * lap_hat_np @ ts[-1] - ts[-2])
    tcat = np.concatenate(ts[:K], axis=1)                               # (N, K*N)
    eye_b = np.eye(B, dtype=np.float32)
    wstk = np.concatenate([np.kron(eye_b, weight_np[k]) for k in range(K)], axis=0)

    slab = np.zeros((CONST_ROWS, LANES), np.float32)
    slab[ROW_T:ROW_T + N, :K * N] = tcat
    slab[ROW_W:ROW_W + K * BCIN, :BCOUT] = wstk
    slab[ROW_BIAS, :BCOUT] = np.tile(np.asarray(bias_np, np.float32), B)
    return jnp.asarray(slab)


def reference(x, lap, w, bias):
    """Pure-JAX reference of the same forward pass (correctness check)."""
    xp = jnp.max(x.reshape(B, N, P, C_IN), axis=2)
    t_prev = xp
    out = jnp.einsum('bnc,co->bno', t_prev, w[0])
    t_cur = jnp.einsum('nm,bmc->bnc', lap, t_prev)
    out = out + jnp.einsum('bnc,co->bno', t_cur, w[1])
    for k in range(2, K):
        t_next = 2.0 * jnp.einsum('nm,bmc->bnc', lap, t_cur) - t_prev
        out = out + jnp.einsum('bnc,co->bno', t_next, w[k])
        t_prev, t_cur = t_cur, t_next
    out = out + bias
    flat = out.reshape(-1, C_OUT)
    mean = flat.mean(axis=0)
    var = ((flat - mean) ** 2).mean(axis=0)
    return jnp.maximum((out - mean) * jax.lax.rsqrt(var + BN_EPS), 0.0)


if __name__ == "__main__":
    key = jax.random.PRNGKey(0)
    kx, kw = jax.random.split(key)

    # deterministic parameter init (glorot-like for ChebConv weights)
    scale = float(np.sqrt(2.0 / (C_IN + C_OUT)))
    weight = jax.random.normal(kw, (K, C_IN, C_OUT), jnp.float32) * scale
    bias = jnp.linspace(-0.1, 0.1, C_OUT, dtype=jnp.float32)

    lap_np = build_scaled_laplacian(N, lambda_max=2.0)
    const_slab = build_const_slab(lap_np, np.asarray(weight), np.asarray(bias))

    x = jax.random.normal(kx, (B, V, C_IN), jnp.float32)

    out = spherical_cheb_bn_pool(x, const_slab)
    out = jax.block_until_ready(out)

    ref = reference(x, jnp.asarray(lap_np), weight, bias)
    assert out.shape == (B, N, C_OUT)
    np.testing.assert_allclose(np.asarray(out), np.asarray(ref), rtol=1e-4, atol=1e-4)
    print("KERNEL_OK")
</pallas_src>

<mosaic_0001>
module attributes {stable_mosaic.version = 11 : i64} {
  func.func @_fused_kernel(%arg0: memref<16x32xf32, #tpu.memory_space<vmem>>, %arg1: memref<48x128xf32, #tpu.memory_space<vmem>>, %arg2: memref<16x128xf32, #tpu.memory_space<vmem>>) attributes {dimension_semantics = [], scalar_prefetch = 0 : i64, scratch_operands = 0 : i64, tpu.core_type = #tpu.core_type<tc>} {
    %c0 = arith.constant 0 : index
    %c0_0 = arith.constant 0 : index
    %0 = vector.load %arg0[%c0, %c0_0] : memref<16x32xf32, #tpu.memory_space<vmem>>, vector<16x32xf32>
    %1 = vector.extract_strided_slice %0 {offsets = [0, 0], sizes = [16, 8], strides = [1, 1]} : vector<16x32xf32> to vector<16x8xf32>
    %2 = vector.extract_strided_slice %0 {offsets = [0, 8], sizes = [16, 8], strides = [1, 1]} : vector<16x32xf32> to vector<16x8xf32>
    %3 = arith.maximumf %1, %2 : vector<16x8xf32>
    %4 = vector.extract_strided_slice %0 {offsets = [0, 16], sizes = [16, 8], strides = [1, 1]} : vector<16x32xf32> to vector<16x8xf32>
    %5 = arith.maximumf %3, %4 : vector<16x8xf32>
    %6 = vector.extract_strided_slice %0 {offsets = [0, 24], sizes = [16, 8], strides = [1, 1]} : vector<16x32xf32> to vector<16x8xf32>
    %7 = arith.maximumf %5, %6 : vector<16x8xf32>
    %c0_1 = arith.constant 0 : index
    %c0_2 = arith.constant 0 : index
    %8 = vector.load %arg1[%c0_1, %c0_2] : memref<48x128xf32, #tpu.memory_space<vmem>>, vector<16x48xf32>
    %c16 = arith.constant 16 : index
    %c0_3 = arith.constant 0 : index
    %9 = vector.load %arg1[%c16, %c0_3] : memref<48x128xf32, #tpu.memory_space<vmem>>, vector<24x16xf32>
    %c40 = arith.constant 40 : index
    %c0_4 = arith.constant 0 : index
    %10 = vector.load %arg1[%c40, %c0_4] : memref<48x128xf32, #tpu.memory_space<vmem>>, vector<1x16xf32>
    %cst = arith.constant 0.000000e+00 : f32
    %11 = vector.broadcast %cst : f32 to vector<16x8xf32>
    %12 = tpu.concatenate %7, %11, %11 in 1 : vector<16x8xf32>, vector<16x8xf32>, vector<16x8xf32> -> vector<16x24xf32>
    %13 = tpu.concatenate %11, %7, %11 in 1 : vector<16x8xf32>, vector<16x8xf32>, vector<16x8xf32> -> vector<16x24xf32>
    %14 = tpu.concatenate %11, %11, %7 in 1 : vector<16x8xf32>, vector<16x8xf32>, vector<16x8xf32> -> vector<16x24xf32>
    %15 = tpu.concatenate %12, %13, %14 in 0 : vector<16x24xf32>, vector<16x24xf32>, vector<16x24xf32> -> vector<48x24xf32>
    %cst_5 = arith.constant dense<0.000000e+00> : vector<48x16xf32>
    %16 = tpu.matmul %15, %9, %cst_5 {dimension_numbers = #tpu.dot_dimension_numbers<[1], [0], [0], [1], [0, 0, 1, 1], [], []>} : vector<48x24xf32>, vector<24x16xf32>, vector<48x16xf32> -> vector<48x16xf32>
    %cst_6 = arith.constant dense<0.000000e+00> : vector<16x16xf32>
    %17 = tpu.matmul %8, %16, %cst_6 {dimension_numbers = #tpu.dot_dimension_numbers<[1], [0], [0], [1], [0, 0, 1, 1], [], []>} : vector<16x48xf32>, vector<48x16xf32>, vector<16x16xf32> -> vector<16x16xf32>
    %18 = vector.broadcast %10 : vector<1x16xf32> to vector<16x16xf32>
    %19 = arith.addf %17, %18 : vector<16x16xf32>
    %cst_7 = arith.constant dense<0.000000e+00> : vector<16xf32>
    %20 = vector.multi_reduction <add>, %19, %cst_7 [0] : vector<16x16xf32> to vector<16xf32>
    %21 = vector.shape_cast %20 : vector<16xf32> to vector<1x16xf32>
    %22 = vector.extract_strided_slice %21 {offsets = [0, 0], sizes = [1, 8], strides = [1, 1]} : vector<1x16xf32> to vector<1x8xf32>
    %23 = vector.extract_strided_slice %21 {offsets = [0, 8], sizes = [1, 8], strides = [1, 1]} : vector<1x16xf32> to vector<1x8xf32>
    %24 = arith.addf %22, %23 : vector<1x8xf32>
    %cst_8 = arith.constant 3.200000e+01 : f32
    %25 = vector.broadcast %cst_8 : f32 to vector<1x8xf32>
    %26 = arith.divf %24, %25 : vector<1x8xf32>
    %27 = tpu.concatenate %26, %26 in 1 : vector<1x8xf32>, vector<1x8xf32> -> vector<1x16xf32>
    %28 = vector.broadcast %27 : vector<1x16xf32> to vector<16x16xf32>
    %29 = arith.subf %19, %28 : vector<16x16xf32>
    %30 = arith.mulf %29, %29 : vector<16x16xf32>
    %cst_9 = arith.constant dense<0.000000e+00> : vector<16xf32>
    %31 = vector.multi_reduction <add>, %30, %cst_9 [0] : vector<16x16xf32> to vector<16xf32>
    %32 = vector.shape_cast %31 : vector<16xf32> to vector<1x16xf32>
    %33 = vector.extract_strided_slice %32 {offsets = [0, 0], sizes = [1, 8], strides = [1, 1]} : vector<1x16xf32> to vector<1x8xf32>
    %34 = vector.extract_strided_slice %32 {offsets = [0, 8], sizes = [1, 8], strides = [1, 1]} : vector<1x16xf32> to vector<1x8xf32>
    %35 = arith.addf %33, %34 : vector<1x8xf32>
    %cst_10 = arith.constant 3.200000e+01 : f32
    %36 = vector.broadcast %cst_10 : f32 to vector<1x8xf32>
    %37 = arith.divf %35, %36 : vector<1x8xf32>
    %cst_11 = arith.constant 9.99999974E-6 : f32
    %38 = vector.broadcast %cst_11 : f32 to vector<1x8xf32>
    %39 = arith.addf %37, %38 : vector<1x8xf32>
    %40 = math.rsqrt %39 : vector<1x8xf32>
    %41 = tpu.concatenate %40, %40 in 1 : vector<1x8xf32>, vector<1x8xf32> -> vector<1x16xf32>
    %42 = vector.broadcast %41 : vector<1x16xf32> to vector<16x16xf32>
    %43 = arith.mulf %29, %42 : vector<16x16xf32>
    %cst_12 = arith.constant 0.000000e+00 : f32
    %44 = vector.broadcast %cst_12 : f32 to vector<16x16xf32>
    %45 = arith.maximumf %43, %44 : vector<16x16xf32>
    %cst_13 = arith.constant 0.000000e+00 : f32
    %46 = vector.broadcast %cst_13 : f32 to vector<16x112xf32>
    %47 = tpu.concatenate %45, %46 in 1 : vector<16x16xf32>, vector<16x112xf32> -> vector<16x128xf32>
    %c0_14 = arith.constant 0 : index
    %c0_15 = arith.constant 0 : index
    %48 = vector.load %arg2[%c0_14, %c0_15] : memref<16x128xf32, #tpu.memory_space<vmem>>, vector<16x128xf32>
    tpu.vector_store %arg2[%c0_14, %c0_15], %47 {strides = array<i32>} : memref<16x128xf32, #tpu.memory_space<vmem>>, vector<16x128xf32>,
    return
  }
}

</mosaic_0001>

<llo_original>
// kernel: tpu_custom_call.1
$region0: #{tpu_custom_call.1}
  #allocation0 [shape = 'u32[]', space=smem, size = 0x4, offset = 0x4, fixed_abs, tag = 'smem constant byte address 0x4 - core index']
  #allocation1 [shape = 'u32[144,128]{1,0:T(1,128)}', space=vmem, size = 0x12000, scoped, tag = 'internal scratch']
  %s0 = inlined_call_operand.hbm [shape: f32[16,32], index: 0, kind: input, shape index: {}]
  %s1 = inlined_call_operand.hbm [shape: f32[48,128], index: 1, kind: input, shape index: {}]
  %s2 = inlined_call_operand.hbm [shape: f32[16,128], index: 2, kind: output, shape index: {}]
  %s3 = sld [smem:[#allocation0]]
  $region26: #{tpu_custom_call.1} parent=0
    _
  %s5 = ssub.s32 1, %s3
  %s6 = scalar_select 0, %s5, %s3
  $region1: #{tpu_custom_call.1} parent=0
    #allocation2 [shape = 'u8[8192]{0}', space=vmem, size = 0x2000, scoped, tag = 'input window, operand 0, single buffered']
    #allocation3 [shape = 's32[1]{0}', space=sflag, size = 0x4, scoped, tag = 'scoped memory for tpu_custom_call.1']
    #allocation4 [shape = 's32[1]{0}', space=sflag, size = 0x4, scoped, tag = 'scoped memory for tpu_custom_call.1']
    #allocation5 [shape = 'u8[24576]{0}', space=vmem, size = 0x6000, scoped, tag = 'input window, operand 1, single buffered']
    #allocation6 [shape = 's32[1]{0}', space=sflag, size = 0x4, scoped, tag = 'scoped memory for tpu_custom_call.1']
    #allocation7 [shape = 'u8[8192]{0}', space=vmem, size = 0x2000, scoped, tag = 'output window, operand 0, single buffered']
    %7 = vsyncpa [#allocation3], 0
    %8 = vsyncpa [#allocation6], 0
    %9 = vsyncpa [#allocation4], 0
    // Predicated region
    $region2: #{tpu_custom_call.1} parent=1 // pred_check
      _
    $region3: #{tpu_custom_call.1} parent=1 // pred_check_branch
      %11 = sbr.rel (0) target = $region5
    $region4: #{tpu_custom_call.1} parent=1 // pred_region
      %s13 = ssub.s32 256, 256
      %14 = vsyncadd [#allocation3], %s13
      %s15 = sshll.u32 [#allocation2], 4
      %s16 = int_to_ptr.vmem [resolvable:$true] %s15
      %21 = dma.hbm_to_vmem [thread:$0]  %s0, 256, %s16, [#allocation3], 128, 128, 8
    $region5: #{tpu_custom_call.1} parent=1 // pred_fallthru
      _
    // Predicated region
    $region6: #{tpu_custom_call.1} parent=1 // pred_check
      _
    $region7: #{tpu_custom_call.1} parent=1 // pred_check_branch
      %23 = sbr.rel (0) target = $region9
    $region8: #{tpu_custom_call.1} parent=1 // pred_region
      %s25 = ssub.s32 768, 768
      %26 = vsyncadd [#allocation6], %s25
      %s27 = sshll.u32 [#allocation5], 4
      %s28 = int_to_ptr.vmem [resolvable:$true] %s27
      %33 = dma.hbm_to_vmem [thread:$0]  %s1, 768, %s28, [#allocation6], 128, 128, 8
    $region9: #{tpu_custom_call.1} parent=1 // pred_fallthru
      _
    // Predicated region
    $region10: #{tpu_custom_call.1} parent=1 // pred_check
      _
    $region11: #{tpu_custom_call.1} parent=1 // pred_check_branch
      %35 = sbr.rel (0) target = $region13
    $region12: #{tpu_custom_call.1} parent=1 // pred_region
      %36 = dma.done [#allocation3], 256
    $region13: #{tpu_custom_call.1} parent=1 // pred_fallthru
      _
    // Predicated region
    $region14: #{tpu_custom_call.1} parent=1 // pred_check
      _
    $region15: #{tpu_custom_call.1} parent=1 // pred_check_branch
      %38 = sbr.rel (0) target = $region17
    $region16: #{tpu_custom_call.1} parent=1 // pred_region
      %39 = dma.done [#allocation6], 768
    $region17: #{tpu_custom_call.1} parent=1 // pred_fallthru
      _
    %v40 = vld [vmem:[#allocation2] sm:$0xff]
    %v41 = vld [vmem:[#allocation2 + $0x8] sm:$0xff]
    %44 = vrot.lane.b32.xlu0 %v40, 120
    %v45 = vpop.permute.xlu0 %44
    %46 = vrot.lane.b32.xlu0 %v41, 120
    %v47 = vpop.permute.xlu0 %46
    %v50 = vmax.f32 %v40, %v45
    %v51 = vmax.f32 %v41, %v47
    %52 = vrot.lane.b32.xlu0 %v40, 112
    %v53 = vpop.permute.xlu0 %52
    %54 = vrot.lane.b32.xlu0 %v41, 112
    %v55 = vpop.permute.xlu0 %54
    %v58 = vmax.f32 %v50, %v53
    %v59 = vmax.f32 %v51, %v55
    %60 = vrot.lane.b32.xlu0 %v40, 104
    %v61 = vpop.permute.xlu0 %60
    %62 = vrot.lane.b32.xlu0 %v41, 104
    %v63 = vpop.permute.xlu0 %62
    %v66 = vmax.f32 %v58, %v61
    %v67 = vmax.f32 %v59, %v63
    %v68 = vld [vmem:[#allocation5] sm:$0xff]
    %v69 = vld [vmem:[#allocation5 + $0x8] sm:$0xff]
    %v70 = vld [vmem:[#allocation5 + $0x10] sm:$0xff]
    %v71 = vld [vmem:[#allocation5 + $0x18] sm:$0xff]
    %v72 = vld [vmem:[#allocation5 + $0x20] sm:$0xff]
    %v73 = vld [vmem:[#allocation5 + $0x28] sm:$0x1]
    %vm74 = vcmask 64512
    %v75 = vsel %vm74, %v66, 0.0
    %v76 = vsel %vm74, %v67, 0.0
    %vm77 = vcmask 130048
    %v78 = vsel %vm77, %v75, 0.0
    %v79 = vsel %vm77, %v76, 0.0
    %82 = vrot.lane.b32.xlu0 %v66, 8
    %v83 = vpop.permute.xlu0 %82
    %84 = vrot.lane.b32.xlu0 %v67, 8
    %v85 = vpop.permute.xlu0 %84
    %v88 = vsel %vm74, 0.0, %v83
    %v89 = vsel %vm74, 0.0, %v85
    %v90 = vsel %vm77, %v88, 0.0
    %v91 = vsel %vm77, %v89, 0.0
    %92 = vrot.lane.b32.xlu0 %v66, 16
    %v93 = vpop.permute.xlu0 %92
    %94 = vrot.lane.b32.xlu0 %v67, 16
    %v95 = vpop.permute.xlu0 %94
    %v98 = vsel %vm77, 0.0, %v93
    %v99 = vsel %vm77, 0.0, %v95
    %vm100 = vcmask 195584
    %v102 = vsel %vm100, %v78, 0
    %v105 = vsel %vm100, %v79, 0
    %v108 = vsel %vm100, %v90, 0
    %v111 = vsel %vm100, %v91, 0
    %v114 = vsel %vm100, %v98, 0
    %v117 = vsel %vm100, %v99, 0
    %119 = vmatprep.subr.mxu0 0.0
    %120 = vmatpush1.msra.mxu0 %v70
    %121 = vmatprep.subr.mxu0 0.0
    %122 = vmatpush1.msra.mxu0 %v71
    %123 = vmatprep.subr.mxu0 0.0
    %124 = vmatpush1.msra.mxu0 %v72
    %125 = vmatprep.subr.mxu0 0.0
    %126 = vmatpush1.msra.mxu0 0.0
    %127 = vmatprep.subr.mxu0 0.0
    %128 = vmatpush1.msra.mxu0 0.0
    %129 = vmatprep.subr.mxu0 0.0
    %130 = vmatpush1.msra.mxu0 0.0
    %131 = vmatprep.subr.mxu0 0.0
    %132 = vmatpush1.msra.mxu0 0.0
    %133 = vmatprep.subr.mxu0 0.0
    %134 = vmatpush1.msra.mxu0 0.0
    %135 = vmatprep.subr.mxu0 0.0
    %136 = vmatpush1.msra.mxu0 0.0
    %137 = vmatprep.subr.mxu0 0.0
    %138 = vmatpush1.msra.mxu0 0.0
    %139 = vmatprep.subr.mxu0 0.0
    %140 = vmatpush1.msra.mxu0 0.0
    %141 = vmatprep.subr.mxu0 0.0
    %142 = vmatpush1.msra.mxu0 0.0
    %143 = vmatprep.subr.mxu0 0.0
    %144 = vmatpush1.msra.mxu0 0.0
    %145 = vmatprep.subr.mxu0 0.0
    %146 = vmatpush1.msra.mxu0 0.0
    %147 = vmatprep.subr.mxu0 0.0
    %148 = vmatpush1.msra.mxu0 0.0
    %149 = vmatprep.subr.mxu0 0.0
    %150 = vmatpush1.msra.mxu0 0.0
    %151 = vmatprep.subr.mxu0 0.0
    %152 = vmatpush1.msra.mxu0 0.0
    %153 = vmatprep.subr.mxu0 0.0
    %154 = vmatpush1.msra.mxu0 0.0
    %155 = vmatprep.subr.mxu0 0.0
    %156 = vmatpush1.msra.mxu0 0.0
    %157 = vmatprep.subr.mxu0 0.0
    %158 = vmatpush1.msra.mxu0 0.0
    %159 = vmatprep.subr.mxu0 0.0
    %160 = vmatpush1.msra.mxu0 0.0
    %161 = vmatprep.subr.mxu0 0.0
    %162 = vmatpush1.msra.mxu0 0.0
    %163 = vmatprep.subr.mxu0 0.0
    %164 = vmatpush1.msra.mxu0 0.0
    %165 = vmatprep.subr.mxu0 0.0
    %166 = vmatpush1.msra.mxu0 0.0
    %167 = vmatprep.subr.mxu0 0.0
    %168 = vmatpush1.msra.mxu0 0.0
    %169 = vmatprep.subr.mxu0 0.0
    %170 = vmatpush1.msra.mxu0 0.0
    %171 = vmatprep.subr.mxu0 0.0
    %172 = vmatpush1.msra.mxu0 0.0
    %173 = vmatprep.subr.mxu0 0.0
    %174 = vmatpush1.msra.mxu0 0.0
    %175 = vmatprep.subr.mxu0 0.0
    %176 = vmatpush1.msra.mxu0 0.0
    %177 = vmatprep.subr.mxu0 0.0
    %178 = vmatpush1.msra.mxu0 0.0
    %179 = vmatprep.subr.mxu0 0.0
    %180 = vmatpush1.msra.mxu0 0.0
    %181 = vmatprep.subr.mxu0 0.0
    %182 = vmatpush1.msra.mxu0 0.0
    %183 = vmatprep.mubr.f32.mxu0 0.0
    %184 = vmatmul.mubr.f32.gmra.mrb[0].mxu0 %v102
    %v185 = vpop.f32.mrb[0].mxu0
    %v186 = vadd.f32 0.0, %v185
    %v187 = vpop.f32.mrb[0].mxu0
    %188 = vmatprep.mubr.f32.mxu0 0.0
    %189 = vmatmul.mubr.f32.gmra.mrb[0].mxu0 %v105
    %v190 = vpop.f32.mrb[0].mxu0
    %v191 = vadd.f32 0.0, %v190
    %v192 = vpop.f32.mrb[0].mxu0
    %193 = vmatprep.mubr.f32.mxu0 0.0
    %194 = vmatmul.mubr.f32.gmra.mrb[0].mxu0 %v108
    %v195 = vpop.f32.mrb[0].mxu0
    %v196 = vadd.f32 0.0, %v195
    %v197 = vpop.f32.mrb[0].mxu0
    %198 = vmatprep.mubr.f32.mxu0 0.0
    %199 = vmatmul.mubr.f32.gmra.mrb[0].mxu0 %v111
    %v200 = vpop.f32.mrb[0].mxu0
    %v201 = vadd.f32 0.0, %v200
    %v202 = vpop.f32.mrb[0].mxu0
    %203 = vmatprep.mubr.f32.mxu0 0.0
    %204 = vmatmul.mubr.f32.gmra.mrb[0].mxu0 %v114
    %v205 = vpop.f32.mrb[0].mxu0
    %v206 = vadd.f32 0.0, %v205
    %v207 = vpop.f32.mrb[0].mxu0
    %208 = vmatprep.mubr.f32.mxu0 0.0
    %209 = vmatmul.mubr.f32.gmra.mrb[0].mxu0 %v117
    %v210 = vpop.f32.mrb[0].mxu0
    %v211 = vadd.f32 0.0, %v210
    %v212 = vpop.f32.mrb[0].mxu0
    %213 = vdwg.mxu0
    %v214 = vlaneseq
    %v215 = vshrl.u32 %v214, 7
    %v216 = vsub.s32 0, %v215
    %v217 = vrot.slane %v73, %v216
    %vm218 = vcmask 392192
    %v220 = vsel %vm218, %v68, 0
    %v223 = vsel %vm218, %v69, 0
    %225 = vmatprep.subr.mxu0 0.0
    %226 = vmatpush1.msra.mxu0 %v186
    %227 = vmatprep.subr.mxu0 0.0
    %228 = vmatpush1.msra.mxu0 %v191
    %229 = vmatprep.subr.mxu0 0.0
    %230 = vmatpush1.msra.mxu0 %v196
    %231 = vmatprep.subr.mxu0 0.0
    %232 = vmatpush1.msra.mxu0 %v201
    %233 = vmatprep.subr.mxu0 0.0
    %234 = vmatpush1.msra.mxu0 %v206
    %235 = vmatprep.subr.mxu0 0.0
    %236 = vmatpush1.msra.mxu0 %v211
    %237 = vmatprep.subr.mxu0 0.0
    %238 = vmatpush1.msra.mxu0 0.0
    %239 = vmatprep.subr.mxu0 0.0
    %240 = vmatpush1.msra.mxu0 0.0
    %241 = vmatprep.subr.mxu0 0.0
    %242 = vmatpush1.msra.mxu0 0.0
    %243 = vmatprep.subr.mxu0 0.0
    %244 = vmatpush1.msra.mxu0 0.0
    %245 = vmatprep.subr.mxu0 0.0
    %246 = vmatpush1.msra.mxu0 0.0
    %247 = vmatprep.subr.mxu0 0.0
    %248 = vmatpush1.msra.mxu0 0.0
    %249 = vmatprep.subr.mxu0 0.0
    %250 = vmatpush1.msra.mxu0 0.0
    %251 = vmatprep.subr.mxu0 0.0
    %252 = vmatpush1.msra.mxu0 0.0
    %253 = vmatprep.subr.mxu0 0.0
    %254 = vmatpush1.msra.mxu0 0.0
    %255 = vmatprep.subr.mxu0 0.0
    %256 = vmatpush1.msra.mxu0 0.0
    %257 = vmatprep.subr.mxu0 0.0
    %258 = vmatpush1.msra.mxu0 0.0
    %259 = vmatprep.subr.mxu0 0.0
    %260 = vmatpush1.msra.mxu0 0.0
    %261 = vmatprep.subr.mxu0 0.0
    %262 = vmatpush1.msra.mxu0 0.0
    %263 = vmatprep.subr.mxu0 0.0
    %264 = vmatpush1.msra.mxu0 0.0
    %265 = vmatprep.subr.mxu0 0.0
    %266 = vmatpush1.msra.mxu0 0.0
    %267 = vmatprep.subr.mxu0 0.0
    %268 = vmatpush1.msra.mxu0 0.0
    %269 = vmatprep.subr.mxu0 0.0
    %270 = vmatpush1.msra.mxu0 0.0
    %271 = vmatprep.subr.mxu0 0.0
    %272 = vmatpush1.msra.mxu0 0.0
    %273 = vmatprep.subr.mxu0 0.0
    %274 = vmatpush1.msra.mxu0 0.0
    %275 = vmatprep.subr.mxu0 0.0
    %276 = vmatpush1.msra.mxu0 0.0
    %277 = vmatprep.subr.mxu0 0.0
    %278 = vmatpush1.msra.mxu0 0.0
    %279 = vmatprep.subr.mxu0 0.0
    %280 = vmatpush1.msra.mxu0 0.0
    %281 = vmatprep.subr.mxu0 0.0
    %282 = vmatpush1.msra.mxu0 0.0
    %283 = vmatprep.subr.mxu0 0.0
    %284 = vmatpush1.msra.mxu0 0.0
    %285 = vmatprep.subr.mxu0 0.0
    %286 = vmatpush1.msra.mxu0 0.0
    %287 = vmatprep.subr.mxu0 0.0
    %288 = vmatpush1.msra.mxu0 0.0
    %289 = vmatprep.mubr.f32.mxu0 0.0
    %290 = vmatmul.mubr.f32.gmra.mrb[0].mxu0 %v220
    %v291 = vpop.f32.mrb[0].mxu0
    %v292 = vadd.f32 %v217, %v291
    %v293 = vpop.f32.mrb[0].mxu0
    %294 = vmatprep.mubr.f32.mxu0 0.0
    %295 = vmatmul.mubr.f32.gmra.mrb[0].mxu0 %v223
    %v296 = vpop.f32.mrb[0].mxu0
    %v297 = vadd.f32 %v217, %v296
    %v298 = vpop.f32.mrb[0].mxu0
    %299 = vdwg.mxu0
    %v300 = vsel %vm77, %v292, 0.0
    %v301 = vsel %vm77, %v297, 0.0
    %v302 = vadd.f32 %v300, %v301
    %v303 = vrot.slane %v302, 4
    %v304 = vadd.f32 %v302, %v303
    %v305 = vrot.slane %v304, 2
    %v306 = vadd.f32 %v304, %v305
    %v307 = vrot.slane %v306, 1
    %v308 = vadd.f32 %v306, %v307
    %310 = vrot.lane.b32.xlu0 %v308, 120
    %v311 = vpop.permute.xlu0 %310
    %v313 = vadd.f32 %v308, %v311
    %v314 = vrcp.pop 32.0
    %v315 = vmul.f32 %v313, %v314
    %317 = vrot.lane.b32.xlu0 %v315, 8
    %v318 = vpop.permute.xlu0 %317
    %v320 = vsel %vm74, %v315, %v318
    %v321 = vlaneseq
    %v322 = vshrl.u32 %v321, 7
    %v323 = vsub.s32 0, %v322
    %v324 = vrot.slane %v320, %v323
    %v325 = vsub.f32 %v292, %v324
    %v326 = vsub.f32 %v297, %v324
    %v327 = vmul.f32 %v325, %v325
    %v328 = vmul.f32 %v326, %v326
    %v329 = vsel %vm77, %v327, 0.0
    %v330 = vsel %vm77, %v328, 0.0
    %v331 = vadd.f32 %v329, %v330
    %v332 = vrot.slane %v331, 4
    %v333 = vadd.f32 %v331, %v332
    %v334 = vrot.slane %v333, 2
    %v335 = vadd.f32 %v333, %v334
    %v336 = vrot.slane %v335, 1
    %v337 = vadd.f32 %v335, %v336
    %339 = vrot.lane.b32.xlu0 %v337, 120
    %v340 = vpop.permute.xlu0 %339
    %v342 = vadd.f32 %v337, %v340
    %v343 = vmul.f32 %v342, %v314
    %v344 = vadd.f32 %v343, 1e-05
    %v345 = vrsqrt.pop %v344
    %347 = vrot.lane.b32.xlu0 %v345, 8
    %v348 = vpop.permute.xlu0 %347
    %v350 = vsel %vm74, %v345, %v348
    %v351 = vlaneseq
    %v352 = vshrl.u32 %v351, 7
    %v353 = vsub.s32 0, %v352
    %v354 = vrot.slane %v350, %v353
    %v355 = vmul.f32 %v325, %v354
    %v356 = vmul.f32 %v326, %v354
    %v357 = vmax.f32 %v355, 0.0
    %v358 = vmax.f32 %v356, 0.0
    %v359 = vsel %vm77, %v357, 0.0
    %v360 = vsel %vm77, %v358, 0.0
    %361 = vst [vmem:[#allocation7] sm:$0xff] %v359
    %362 = vst [vmem:[#allocation7 + $0x8] sm:$0xff] %v360
    // Predicated region
    $region18: #{tpu_custom_call.1} parent=1 // pred_check
      _
    $region19: #{tpu_custom_call.1} parent=1 // pred_check_branch
      %364 = sbr.rel (0) target = $region21
    $region20: #{tpu_custom_call.1} parent=1 // pred_region
      %s366 = ssub.s32 256, 256
      %367 = vsyncadd [#allocation4], %s366
      %s368 = sshll.u32 [#allocation7], 4
      %s369 = int_to_ptr.vmem [resolvable:$true] %s368
      %374 = dma.vmem_to_hbm [thread:$0]  %s369, 256, %s2, [#allocation4], 128, 128, 8
    $region21: #{tpu_custom_call.1} parent=1 // pred_fallthru
      _
    // Predicated region
    $region22: #{tpu_custom_call.1} parent=1 // pred_check
      _
    $region23: #{tpu_custom_call.1} parent=1 // pred_check_branch
      %376 = sbr.rel (0) target = $region25
    $region24: #{tpu_custom_call.1} parent=1 // pred_region
      %377 = dma.done [#allocation4], 256
    $region25: #{tpu_custom_call.1} parent=1 // pred_fallthru
      _
    %378 = vsyncpa [#allocation3], 1
    %379 = vsyncpa [#allocation6], 1
    %380 = vsyncpa [#allocation4], 1

</llo_original>
